<compile_context>
chip_gen: v7x
topology: tpu7x:2x2x1
jax: 0.10.0
libtpu: 0.0.40
codegen_flags: <defaults>
</compile_context>

<pallas_src>
import numpy as np
import jax
import jax.numpy as jnp
from jax.experimental import pallas as pl
from jax.experimental.pallas import tpu as pltpu


def _interp_matrix_np(out_size, in_size):
    """(out_size, in_size) row-interp matrix, bilinear, align_corners=True."""
    M = np.zeros((out_size, in_size), dtype=np.float32)
    if out_size == 1:
        src = np.zeros((1,), dtype=np.float64)
    else:
        src = np.arange(out_size, dtype=np.float64) * (in_size - 1) / (out_size - 1)
    i0 = np.clip(np.floor(src).astype(np.int64), 0, in_size - 1)
    i1 = np.minimum(i0 + 1, in_size - 1)
    frac = (src - i0).astype(np.float32)
    for o in range(out_size):
        M[o, i0[o]] += 1.0 - frac[o]
        M[o, i1[o]] += frac[o]
    return M


def _bilinear_kron_np(h_out, w_out, h_in, w_in):
    """K of shape (h_in*w_in, h_out*w_out): x_flat @ K == bilinear resize."""
    Rh = _interp_matrix_np(h_out, h_in)   # (Hout, Hin)
    Rw = _interp_matrix_np(w_out, w_in)   # (Wout, Win)
    # K[hi*Win + wi, ho*Wout + wo] = Rh[ho, hi] * Rw[wo, wi]
    return np.kron(Rh.T, Rw.T)            # (Hin*Win, Hout*Wout)


def _make_kernel(n_same, has_rz):
    """Trailing args layout:
       [same_0 .. same_{n_same-1}, (X_rz, K_rz if has_rz), out_ref]
    """
    def kernel(target_ref, edge_ref, wbig_ref, ke_ref, *args):
        out_ref = args[-1]

        # 1x1 conv (+ bias via augmented ones-row/bias-column) as a row-space
        # matmul with block-diagonal kron(I_B, W):
        #   (B*C, B*Cin+1) @ (B*Cin+1, He*We) -> (B*C, He*We)
        conv = jnp.dot(wbig_ref[...], edge_ref[...],
                       preferred_element_type=jnp.float32)
        # Bilinear resize of the conv output (one lane-dense MXU matmul); the
        # folded bias survives exactly because each ke column sums to 1.
        acc = jnp.dot(conv, ke_ref[...], preferred_element_type=jnp.float32)

        # Same-size others: align_corners=True resize is exactly identity.
        for i in range(n_same):
            acc = acc + args[i][...]

        # All differently-sized others fused into ONE MXU matmul:
        #   (B*C, sum hi*wi) @ (sum hi*wi, H*W)
        if has_rz:
            acc = acc + jnp.dot(args[n_same][...], args[n_same + 1][...],
                                preferred_element_type=jnp.float32)

        # Gating: (1 - target) * sum(others) + target  (lane-dense store).
        t = target_ref[...]
        out_ref[...] = (1.0 - t) * acc + t

    return kernel


def msfcm_gff(target, other_targets, edge, conv_w, conv_b):
    """Pallas implementation of MSFCM_GFF.forward. All tensors are NCHW f32."""
    B, C, H, W = target.shape
    _, Cin, He, We = edge.shape
    assert conv_w.shape == (C, Cin) and conv_b.shape == (C,)
    P = H * W
    Pe = He * We
    BC = B * C

    # Lane-dense 2-D slabs (contiguous reshapes -> free in XLA).
    target_flat = target.reshape(BC, P).astype(jnp.float32)

    # Edge slab augmented with a ones row so the bias rides inside the matmul.
    edge_aug = jnp.concatenate(
        [edge.reshape(B * Cin, Pe).astype(jnp.float32),
         jnp.ones((1, Pe), jnp.float32)], axis=0)               # (B*Cin+1, Pe)

    # Block-diagonal 1x1-conv weight over the batch-folded row space, with the
    # per-row bias appended as an extra column (pairs with the ones row).
    wblk = jnp.kron(jnp.eye(B, dtype=jnp.float32), conv_w.astype(jnp.float32))
    bias_col = jnp.tile(conv_b.astype(jnp.float32), B).reshape(BC, 1)
    wbig_aug = jnp.concatenate([wblk, bias_col], axis=1)        # (BC, B*Cin+1)

    # Resize matrix for the conv output.
    ke = jnp.asarray(_bilinear_kron_np(H, W, He, We))           # (Pe, P)

    # Split "other" sources: same-size ones are identity adds; different-size
    # ones are fused into a single concatenated matmul.
    same_inputs = []
    rz_slabs, rz_ks = [], []
    for o in other_targets:
        hi, wi = o.shape[2], o.shape[3]
        o_flat = o.reshape(BC, hi * wi).astype(jnp.float32)
        if (hi, wi) == (H, W):
            same_inputs.append(o_flat)
        else:
            rz_slabs.append(o_flat)
            rz_ks.append(jnp.asarray(_bilinear_kron_np(H, W, hi, wi)))

    has_rz = len(rz_slabs) > 0
    rz_inputs = []
    if has_rz:
        x_rz = jnp.concatenate(rz_slabs, axis=1)                # (BC, sum hi*wi)
        k_rz = jnp.concatenate(rz_ks, axis=0)                   # (sum hi*wi, P)
        rz_inputs = [x_rz, k_rz]

    inputs = [target_flat, edge_aug, wbig_aug, ke] + same_inputs + rz_inputs

    def _full_spec(shape):
        return pl.BlockSpec(shape, lambda i: (0, 0))

    in_specs = [_full_spec(x.shape) for x in inputs]

    # Advisory cost hint for the XLA scheduler.
    rz_cols = int(sum(s.shape[1] for s in rz_slabs))
    flops = 2 * BC * ((B * Cin + 1) * Pe + Pe * P + rz_cols * P) \
        + BC * P * (len(same_inputs) + 3)
    bytes_accessed = int(sum(int(np.prod(x.shape)) * 4 for x in inputs)) + BC * P * 4
    cost = pl.CostEstimate(flops=flops, transcendentals=0,
                           bytes_accessed=bytes_accessed)

    out_flat = pl.pallas_call(
        _make_kernel(len(same_inputs), has_rz),
        out_shape=jax.ShapeDtypeStruct((BC, P), jnp.float32),
        grid=(1,),
        in_specs=in_specs,
        out_specs=pl.BlockSpec((BC, P), lambda i: (0, 0)),
        compiler_params=pltpu.CompilerParams(
            dimension_semantics=("arbitrary",)),
        cost_estimate=cost,
    )(*inputs)

    return out_flat.reshape(B, C, H, W)


def msfcm_gff_reference(target, other_targets, edge, conv_w, conv_b):
    """Pure-JAX reference (separable align_corners=True interpolation)."""
    B, C, H, W = target.shape
    conv = jnp.einsum('oc,bchw->bohw', conv_w, edge) + conv_b[None, :, None, None]
    acc = jnp.zeros_like(target)
    for o in list(other_targets) + [conv]:
        R = jnp.asarray(_interp_matrix_np(H, o.shape[2]))
        CT = jnp.asarray(_interp_matrix_np(W, o.shape[3]).T)
        acc = acc + jnp.einsum('hk,bckw,wv->bchv', R, o, CT)
    return (1.0 - target) * acc + target


if __name__ == "__main__":
    key = jax.random.PRNGKey(0)
    k_t, k_o1, k_o2, k_e, k_w, k_b = jax.random.split(key, 6)

    B, C, H, W = 2, 4, 16, 16     # target / std_out channels
    Cin = 6                       # inplane (edge channels)

    target = jax.random.uniform(k_t, (B, C, H, W), dtype=jnp.float32)
    other_targets = [
        jax.random.normal(k_o1, (B, C, 8, 8), dtype=jnp.float32),     # resized
        jax.random.normal(k_o2, (B, C, 16, 16), dtype=jnp.float32),   # identity
    ]
    edge = jax.random.normal(k_e, (B, Cin, 8, 8), dtype=jnp.float32)

    # 1x1 conv parameters (weight (Cout, Cin, 1, 1) squeezed, bias (Cout,)).
    conv_w = 0.1 * jax.random.normal(k_w, (C, Cin), dtype=jnp.float32)
    conv_b = 0.05 * jax.random.normal(k_b, (C,), dtype=jnp.float32)

    out = msfcm_gff(target, other_targets, edge, conv_w, conv_b)
    out = jax.block_until_ready(out)

    ref = msfcm_gff_reference(target, other_targets, edge, conv_w, conv_b)
    assert out.shape == (B, C, H, W)
    assert jnp.allclose(out, ref, atol=1e-4, rtol=1e-4), "mismatch vs reference"

    print("KERNEL_OK")
</pallas_src>

<mosaic_0001>
module attributes {stable_mosaic.version = 11 : i64} {
  func.func @kernel(%arg0: i32, %arg1: memref<8x256xf32, #tpu.memory_space<vmem>>, %arg2: memref<13x64xf32, #tpu.memory_space<vmem>>, %arg3: memref<8x13xf32, #tpu.memory_space<vmem>>, %arg4: memref<64x256xf32, #tpu.memory_space<vmem>>, %arg5: memref<8x256xf32, #tpu.memory_space<vmem>>, %arg6: memref<8x64xf32, #tpu.memory_space<vmem>>, %arg7: memref<64x256xf32, #tpu.memory_space<vmem>>, %arg8: memref<8x256xf32, #tpu.memory_space<vmem>>) attributes {dimension_semantics = [#tpu.dimension_semantics<arbitrary>], iteration_bounds = array<i64: 1>, scalar_prefetch = 0 : i64, scratch_operands = 0 : i64, tpu.core_type = #tpu.core_type<tc>, window_params = [{pipeline_mode = #tpu.pipeline_mode<synchronous>, transform_indices = @transform_0, window_bounds = array<i64: 8, 256>}, {pipeline_mode = #tpu.pipeline_mode<synchronous>, transform_indices = @transform_1, window_bounds = array<i64: 13, 64>}, {pipeline_mode = #tpu.pipeline_mode<synchronous>, transform_indices = @transform_2, window_bounds = array<i64: 8, 13>}, {pipeline_mode = #tpu.pipeline_mode<synchronous>, transform_indices = @transform_3, window_bounds = array<i64: 64, 256>}, {pipeline_mode = #tpu.pipeline_mode<synchronous>, transform_indices = @transform_4, window_bounds = array<i64: 8, 256>}, {pipeline_mode = #tpu.pipeline_mode<synchronous>, transform_indices = @transform_5, window_bounds = array<i64: 8, 64>}, {pipeline_mode = #tpu.pipeline_mode<synchronous>, transform_indices = @transform_6, window_bounds = array<i64: 64, 256>}, {pipeline_mode = #tpu.pipeline_mode<synchronous>, transform_indices = @transform_7, window_bounds = array<i64: 8, 256>}]} {
    %c0 = arith.constant 0 : index
    %c0_0 = arith.constant 0 : index
    %0 = vector.load %arg3[%c0, %c0_0] : memref<8x13xf32, #tpu.memory_space<vmem>>, vector<8x13xf32>
    %c0_1 = arith.constant 0 : index
    %c0_2 = arith.constant 0 : index
    %1 = vector.load %arg2[%c0_1, %c0_2] : memref<13x64xf32, #tpu.memory_space<vmem>>, vector<13x64xf32>
    %cst = arith.constant dense<0.000000e+00> : vector<8x64xf32>
    %2 = tpu.matmul %0, %1, %cst {dimension_numbers = #tpu.dot_dimension_numbers<[1], [0], [0], [1], [0, 0, 1, 1], [], []>} : vector<8x13xf32>, vector<13x64xf32>, vector<8x64xf32> -> vector<8x64xf32>
    %c0_3 = arith.constant 0 : index
    %c0_4 = arith.constant 0 : index
    %3 = vector.load %arg4[%c0_3, %c0_4] : memref<64x256xf32, #tpu.memory_space<vmem>>, vector<64x256xf32>
    %cst_5 = arith.constant dense<0.000000e+00> : vector<8x256xf32>
    %4 = tpu.matmul %2, %3, %cst_5 {dimension_numbers = #tpu.dot_dimension_numbers<[1], [0], [0], [1], [0, 0, 1, 1], [], []>} : vector<8x64xf32>, vector<64x256xf32>, vector<8x256xf32> -> vector<8x256xf32>
    %c0_6 = arith.constant 0 : index
    %c0_7 = arith.constant 0 : index
    %5 = vector.load %arg5[%c0_6, %c0_7] : memref<8x256xf32, #tpu.memory_space<vmem>>, vector<8x256xf32>
    %6 = arith.addf %4, %5 : vector<8x256xf32>
    %c0_8 = arith.constant 0 : index
    %c0_9 = arith.constant 0 : index
    %7 = vector.load %arg6[%c0_8, %c0_9] : memref<8x64xf32, #tpu.memory_space<vmem>>, vector<8x64xf32>
    %c0_10 = arith.constant 0 : index
    %c0_11 = arith.constant 0 : index
    %8 = vector.load %arg7[%c0_10, %c0_11] : memref<64x256xf32, #tpu.memory_space<vmem>>, vector<64x256xf32>
    %cst_12 = arith.constant dense<0.000000e+00> : vector<8x256xf32>
    %9 = tpu.matmul %7, %8, %cst_12 {dimension_numbers = #tpu.dot_dimension_numbers<[1], [0], [0], [1], [0, 0, 1, 1], [], []>} : vector<8x64xf32>, vector<64x256xf32>, vector<8x256xf32> -> vector<8x256xf32>
    %10 = arith.addf %6, %9 : vector<8x256xf32>
    %c0_13 = arith.constant 0 : index
    %c0_14 = arith.constant 0 : index
    %11 = vector.load %arg1[%c0_13, %c0_14] : memref<8x256xf32, #tpu.memory_space<vmem>>, vector<8x256xf32>
    %cst_15 = arith.constant 1.000000e+00 : f32
    %12 = vector.broadcast %cst_15 : f32 to vector<8x256xf32>
    %13 = arith.subf %12, %11 : vector<8x256xf32>
    %14 = arith.mulf %13, %10 : vector<8x256xf32>
    %15 = arith.addf %14, %11 : vector<8x256xf32>
    %c0_16 = arith.constant 0 : index
    %c0_17 = arith.constant 0 : index
    %16 = vector.load %arg8[%c0_16, %c0_17] : memref<8x256xf32, #tpu.memory_space<vmem>>, vector<8x256xf32>
    tpu.vector_store %arg8[%c0_16, %c0_17], %15 {strides = array<i32>} : memref<8x256xf32, #tpu.memory_space<vmem>>, vector<8x256xf32>,
    return
  }
  func.func @transform_0(%arg0: i32) -> (i32, i32) {
    %c0_i32 = arith.constant 0 : i32
    %c0_i32_0 = arith.constant 0 : i32
    %c0_i32_1 = arith.constant 0 : i32
    return %c0_i32, %c0_i32_0 : i32, i32
  }
  func.func @transform_1(%arg0: i32) -> (i32, i32) {
    %c0_i32 = arith.constant 0 : i32
    %c0_i32_0 = arith.constant 0 : i32
    %c0_i32_1 = arith.constant 0 : i32
    return %c0_i32, %c0_i32_0 : i32, i32
  }
  func.func @transform_2(%arg0: i32) -> (i32, i32) {
    %c0_i32 = arith.constant 0 : i32
    %c0_i32_0 = arith.constant 0 : i32
    %c0_i32_1 = arith.constant 0 : i32
    return %c0_i32, %c0_i32_0 : i32, i32
  }
  func.func @transform_3(%arg0: i32) -> (i32, i32) {
    %c0_i32 = arith.constant 0 : i32
    %c0_i32_0 = arith.constant 0 : i32
    %c0_i32_1 = arith.constant 0 : i32
    return %c0_i32, %c0_i32_0 : i32, i32
  }
  func.func @transform_4(%arg0: i32) -> (i32, i32) {
    %c0_i32 = arith.constant 0 : i32
    %c0_i32_0 = arith.constant 0 : i32
    %c0_i32_1 = arith.constant 0 : i32
    return %c0_i32, %c0_i32_0 : i32, i32
  }
  func.func @transform_5(%arg0: i32) -> (i32, i32) {
    %c0_i32 = arith.constant 0 : i32
    %c0_i32_0 = arith.constant 0 : i32
    %c0_i32_1 = arith.constant 0 : i32
    return %c0_i32, %c0_i32_0 : i32, i32
  }
  func.func @transform_6(%arg0: i32) -> (i32, i32) {
    %c0_i32 = arith.constant 0 : i32
    %c0_i32_0 = arith.constant 0 : i32
    %c0_i32_1 = arith.constant 0 : i32
    return %c0_i32, %c0_i32_0 : i32, i32
  }
  func.func @transform_7(%arg0: i32) -> (i32, i32) {
    %c0_i32 = arith.constant 0 : i32
    %c0_i32_0 = arith.constant 0 : i32
    %c0_i32_1 = arith.constant 0 : i32
    return %c0_i32, %c0_i32_0 : i32, i32
  }
}

</mosaic_0001>

<llo_original>
// kernel: tpu_custom_call.1
$region0: #{tpu_custom_call.1}
  #allocation0 [shape = 'u32[]', space=smem, size = 0x4, offset = 0x4, fixed_abs, tag = 'smem constant byte address 0x4 - core index']
  #allocation1 [shape = 'u32[144,128]{1,0:T(1,128)}', space=vmem, size = 0x12000, scoped, tag = 'internal scratch']
  %s0 = inlined_call_operand.hbm [shape: f32[8,256], index: 0, kind: input, shape index: {}]
  %s1 = inlined_call_operand.hbm [shape: f32[13,64], index: 1, kind: input, shape index: {}]
  %s2 = inlined_call_operand.hbm [shape: f32[8,13], index: 2, kind: input, shape index: {}]
  %s3 = inlined_call_operand.hbm [shape: f32[64,256], index: 3, kind: input, shape index: {}]
  %s4 = inlined_call_operand.hbm [shape: f32[8,256], index: 4, kind: input, shape index: {}]
  %s5 = inlined_call_operand.vmem [shape: f32[8,64], index: 5, kind: input, shape index: {}]
  %s6 = inlined_call_operand.hbm [shape: f32[64,256], index: 6, kind: input, shape index: {}]
  %s7 = inlined_call_operand.hbm [shape: f32[8,256], index: 7, kind: output, shape index: {}]
  %s8 = sld [smem:[#allocation0]]
  $region62: #{tpu_custom_call.1} parent=0
    _
  %s10 = ssub.s32 1, %s8
  %s11 = scalar_select 0, %s10, %s8
  $region1: #{tpu_custom_call.1} parent=0
    #allocation2 [shape = 'u8[8192]{0}', space=vmem, size = 0x2000, scoped, tag = 'input window, operand 0, single buffered']
    #allocation3 [shape = 's32[1]{0}', space=sflag, size = 0x4, scoped, tag = 'scoped memory for tpu_custom_call.1']
    #allocation4 [shape = 's32[1]{0}', space=sflag, size = 0x4, scoped, tag = 'scoped memory for tpu_custom_call.1']
    #allocation5 [shape = 'u8[8192]{0}', space=vmem, size = 0x2000, scoped, tag = 'input window, operand 1, single buffered']
    #allocation6 [shape = 's32[1]{0}', space=sflag, size = 0x4, scoped, tag = 'scoped memory for tpu_custom_call.1']
    #allocation7 [shape = 'u8[4096]{0}', space=vmem, size = 0x1000, scoped, tag = 'input window, operand 2, single buffered']
    #allocation8 [shape = 'u8[65536]{0}', space=vmem, size = 0x10000, scoped, tag = 'input window, operand 3, single buffered']
    #allocation9 [shape = 's32[1]{0}', space=sflag, size = 0x4, scoped, tag = 'scoped memory for tpu_custom_call.1']
    #allocation10 [shape = 'u8[8192]{0}', space=vmem, size = 0x2000, scoped, tag = 'input window, operand 4, single buffered']
    #allocation11 [shape = 'u8[65536]{0}', space=vmem, size = 0x10000, scoped, tag = 'input window, operand 6, single buffered']
    #allocation12 [shape = 's32[1]{0}', space=sflag, size = 0x4, scoped, tag = 'scoped memory for tpu_custom_call.1']
    #allocation13 [shape = 'u8[8192]{0}', space=vmem, size = 0x2000, scoped, tag = 'output window, operand 0, single buffered']
    %12 = vsyncpa [#allocation3], 0
    %13 = vsyncpa [#allocation6], 0
    %14 = vsyncpa [#allocation9], 0
    %15 = vsyncpa [#allocation12], 0
    %16 = vsyncpa [#allocation4], 0
    // Predicated region
    $region2: #{tpu_custom_call.1} parent=1 // pred_check
      _
    $region3: #{tpu_custom_call.1} parent=1 // pred_check_branch
      %18 = sbr.rel (0) target = $region5
    $region4: #{tpu_custom_call.1} parent=1 // pred_region
      %s20 = ssub.s32 256, 256
      %21 = vsyncadd [#allocation3], %s20
      %s23 = sshll.u32 [#allocation2], 4
      %s24 = int_to_ptr.vmem [resolvable:$true] %s23
      %26 = dma.hbm_to_vmem [thread:$0]  %s0, 256, %s24, [#allocation3]
    $region5: #{tpu_custom_call.1} parent=1 // pred_fallthru
      _
    // Predicated region
    $region6: #{tpu_custom_call.1} parent=1 // pred_check
      _
    $region7: #{tpu_custom_call.1} parent=1 // pred_check_branch
      %28 = sbr.rel (0) target = $region9
    $region8: #{tpu_custom_call.1} parent=1 // pred_region
      %s30 = ssub.s32 256, 256
      %31 = vsyncadd [#allocation6], %s30
      %s32 = sshll.u32 [#allocation5], 4
      %s33 = int_to_ptr.vmem [resolvable:$true] %s32
      %38 = dma.hbm_to_vmem [thread:$0]  %s1, 256, %s33, [#allocation6], 128, 128, 8
    $region9: #{tpu_custom_call.1} parent=1 // pred_fallthru
      _
    // Predicated region
    $region10: #{tpu_custom_call.1} parent=1 // pred_check
      _
    $region11: #{tpu_custom_call.1} parent=1 // pred_check_branch
      %40 = sbr.rel (0) target = $region13
    $region12: #{tpu_custom_call.1} parent=1 // pred_region
      %s42 = ssub.s32 128, 128
      %43 = vsyncadd [#allocation6], %s42
      %s45 = sshll.u32 [#allocation7], 4
      %s46 = int_to_ptr.vmem [resolvable:$true] %s45
      %48 = dma.hbm_to_vmem [thread:$0]  %s2, 128, %s46, [#allocation6]
    $region13: #{tpu_custom_call.1} parent=1 // pred_fallthru
      _
    // Predicated region
    $region14: #{tpu_custom_call.1} parent=1 // pred_check
      _
    $region15: #{tpu_custom_call.1} parent=1 // pred_check_branch
      %50 = sbr.rel (0) target = $region17
    $region16: #{tpu_custom_call.1} parent=1 // pred_region
      %s52 = ssub.s32 2048, 2048
      %53 = vsyncadd [#allocation9], %s52
      %s54 = sshll.u32 [#allocation8], 4
      %s55 = int_to_ptr.vmem [resolvable:$true] %s54
      %60 = dma.hbm_to_vmem [thread:$0]  %s3, 2048, %s55, [#allocation9], 256, 256, 16
    $region17: #{tpu_custom_call.1} parent=1 // pred_fallthru
      _
    // Predicated region
    $region18: #{tpu_custom_call.1} parent=1 // pred_check
      _
    $region19: #{tpu_custom_call.1} parent=1 // pred_check_branch
      %62 = sbr.rel (0) target = $region21
    $region20: #{tpu_custom_call.1} parent=1 // pred_region
      %s64 = ssub.s32 256, 256
      %65 = vsyncadd [#allocation9], %s64
      %s67 = sshll.u32 [#allocation10], 4
      %s68 = int_to_ptr.vmem [resolvable:$true] %s67
      %70 = dma.hbm_to_vmem [thread:$0]  %s4, 256, %s68, [#allocation9]
    $region21: #{tpu_custom_call.1} parent=1 // pred_fallthru
      _
    // Predicated region
    $region22: #{tpu_custom_call.1} parent=1 // pred_check
      _
    $region23: #{tpu_custom_call.1} parent=1 // pred_check_branch
      %72 = sbr.rel (0) target = $region25
    $region24: #{tpu_custom_call.1} parent=1 // pred_region
      _
    $region25: #{tpu_custom_call.1} parent=1 // pred_fallthru
      _
    // Predicated region
    $region26: #{tpu_custom_call.1} parent=1 // pred_check
      _
    $region27: #{tpu_custom_call.1} parent=1 // pred_check_branch
      %74 = sbr.rel (0) target = $region29
    $region28: #{tpu_custom_call.1} parent=1 // pred_region
      %s76 = ssub.s32 2048, 2048
      %77 = vsyncadd [#allocation12], %s76
      %s78 = sshll.u32 [#allocation11], 4
      %s79 = int_to_ptr.vmem [resolvable:$true] %s78
      %84 = dma.hbm_to_vmem [thread:$0]  %s6, 2048, %s79, [#allocation12], 256, 256, 16
    $region29: #{tpu_custom_call.1} parent=1 // pred_fallthru
      _
    // Predicated region
    $region30: #{tpu_custom_call.1} parent=1 // pred_check
      _
    $region31: #{tpu_custom_call.1} parent=1 // pred_check_branch
      %86 = sbr.rel (0) target = $region33
    $region32: #{tpu_custom_call.1} parent=1 // pred_region
      %87 = dma.done [#allocation3], 256
    $region33: #{tpu_custom_call.1} parent=1 // pred_fallthru
      _
    // Predicated region
    $region34: #{tpu_custom_call.1} parent=1 // pred_check
      _
    $region35: #{tpu_custom_call.1} parent=1 // pred_check_branch
      %89 = sbr.rel (0) target = $region37
    $region36: #{tpu_custom_call.1} parent=1 // pred_region
      %90 = dma.done [#allocation6], 256
    $region37: #{tpu_custom_call.1} parent=1 // pred_fallthru
      _
    // Predicated region
    $region38: #{tpu_custom_call.1} parent=1 // pred_check
      _
    $region39: #{tpu_custom_call.1} parent=1 // pred_check_branch
      %92 = sbr.rel (0) target = $region41
    $region40: #{tpu_custom_call.1} parent=1 // pred_region
      %93 = dma.done [#allocation6], 128
    $region41: #{tpu_custom_call.1} parent=1 // pred_fallthru
      _
    // Predicated region
    $region42: #{tpu_custom_call.1} parent=1 // pred_check
      _
    $region43: #{tpu_custom_call.1} parent=1 // pred_check_branch
      %95 = sbr.rel (0) target = $region45
    $region44: #{tpu_custom_call.1} parent=1 // pred_region
      %96 = dma.done [#allocation9], 2048
    $region45: #{tpu_custom_call.1} parent=1 // pred_fallthru
      _
    // Predicated region
    $region46: #{tpu_custom_call.1} parent=1 // pred_check
      _
    $region47: #{tpu_custom_call.1} parent=1 // pred_check_branch
      %98 = sbr.rel (0) target = $region49
    $region48: #{tpu_custom_call.1} parent=1 // pred_region
      %99 = dma.done [#allocation9], 256
    $region49: #{tpu_custom_call.1} parent=1 // pred_fallthru
      _
    // Predicated region
    $region50: #{tpu_custom_call.1} parent=1 // pred_check
      _
    $region51: #{tpu_custom_call.1} parent=1 // pred_check_branch
      %101 = sbr.rel (0) target = $region53
    $region52: #{tpu_custom_call.1} parent=1 // pred_region
      %102 = dma.done [#allocation12], 2048
    $region53: #{tpu_custom_call.1} parent=1 // pred_fallthru
      _
    %v103 = vld [vmem:[#allocation7] sm:$0xff]
    %v104 = vld [vmem:[#allocation5] sm:$0xff]
    %v105 = vld [vmem:[#allocation5 + $0x8] sm:$0x1f]
    %vm106 = vcmask 105472
    %v108 = vsel %vm106, %v103, 0
    %vm110 = vcmask 1044480
    %v112 = vsel %vm110, %v105, 0
    %114 = vmatprep.subr.mxu0 0.0
    %115 = vmatpush1.msra.mxu0 %v104
    %116 = vmatprep.subr.mxu0 0.0
    %117 = vmatpush1.msra.mxu0 %v112
    %118 = vmatprep.subr.mxu0 0.0
    %119 = vmatpush1.msra.mxu0 0.0
    %120 = vmatprep.subr.mxu0 0.0
    %121 = vmatpush1.msra.mxu0 0.0
    %122 = vmatprep.subr.mxu0 0.0
    %123 = vmatpush1.msra.mxu0 0.0
    %124 = vmatprep.subr.mxu0 0.0
    %125 = vmatpush1.msra.mxu0 0.0
    %126 = vmatprep.subr.mxu0 0.0
    %127 = vmatpush1.msra.mxu0 0.0
    %128 = vmatprep.subr.mxu0 0.0
    %129 = vmatpush1.msra.mxu0 0.0
    %130 = vmatprep.subr.mxu0 0.0
    %131 = vmatpush1.msra.mxu0 0.0
    %132 = vmatprep.subr.mxu0 0.0
    %133 = vmatpush1.msra.mxu0 0.0
    %134 = vmatprep.subr.mxu0 0.0
    %135 = vmatpush1.msra.mxu0 0.0
    %136 = vmatprep.subr.mxu0 0.0
    %137 = vmatpush1.msra.mxu0 0.0
    %138 = vmatprep.subr.mxu0 0.0
    %139 = vmatpush1.msra.mxu0 0.0
    %140 = vmatprep.subr.mxu0 0.0
    %141 = vmatpush1.msra.mxu0 0.0
    %142 = vmatprep.subr.mxu0 0.0
    %143 = vmatpush1.msra.mxu0 0.0
    %144 = vmatprep.subr.mxu0 0.0
    %145 = vmatpush1.msra.mxu0 0.0
    %146 = vmatprep.subr.mxu0 0.0
    %147 = vmatpush1.msra.mxu0 0.0
    %148 = vmatprep.subr.mxu0 0.0
    %149 = vmatpush1.msra.mxu0 0.0
    %150 = vmatprep.subr.mxu0 0.0
    %151 = vmatpush1.msra.mxu0 0.0
    %152 = vmatprep.subr.mxu0 0.0
    %153 = vmatpush1.msra.mxu0 0.0
    %154 = vmatprep.subr.mxu0 0.0
    %155 = vmatpush1.msra.mxu0 0.0
    %156 = vmatprep.subr.mxu0 0.0
    %157 = vmatpush1.msra.mxu0 0.0
    %158 = vmatprep.subr.mxu0 0.0
    %159 = vmatpush1.msra.mxu0 0.0
    %160 = vmatprep.subr.mxu0 0.0
    %161 = vmatpush1.msra.mxu0 0.0
    %162 = vmatprep.subr.mxu0 0.0
    %163 = vmatpush1.msra.mxu0 0.0
    %164 = vmatprep.subr.mxu0 0.0
    %165 = vmatpush1.msra.mxu0 0.0
    %166 = vmatprep.subr.mxu0 0.0
    %167 = vmatpush1.msra.mxu0 0.0
    %168 = vmatprep.subr.mxu0 0.0
    %169 = vmatpush1.msra.mxu0 0.0
    %170 = vmatprep.subr.mxu0 0.0
    %171 = vmatpush1.msra.mxu0 0.0
    %172 = vmatprep.subr.mxu0 0.0
    %173 = vmatpush1.msra.mxu0 0.0
    %174 = vmatprep.subr.mxu0 0.0
    %175 = vmatpush1.msra.mxu0 0.0
    %176 = vmatprep.subr.mxu0 0.0
    %177 = vmatpush1.msra.mxu0 0.0
    %178 = vmatprep.mubr.f32.mxu0 0.0
    %179 = vmatmul.mubr.f32.gmra.mrb[0].mxu0 %v108
    %v180 = vpop.f32.mrb[0].mxu0
    %v181 = vadd.f32 0.0, %v180
    %v182 = vpop.f32.mrb[0].mxu0
    %183 = vdwg.mxu0
    %v184 = vld [vmem:[#allocation8] sm:$0xff]
    %v185 = vld [vmem:[#allocation8 + $0x8] sm:$0xff]
    %v186 = vld [vmem:[#allocation8 + $0x10] sm:$0xff]
    %v187 = vld [vmem:[#allocation8 + $0x18] sm:$0xff]
    %v188 = vld [vmem:[#allocation8 + $0x20] sm:$0xff]
    %v189 = vld [vmem:[#allocation8 + $0x28] sm:$0xff]
    %v190 = vld [vmem:[#allocation8 + $0x30] sm:$0xff]
    %v191 = vld [vmem:[#allocation8 + $0x38] sm:$0xff]
    %v192 = vld [vmem:[#allocation8 + $0x40] sm:$0xff]
    %v193 = vld [vmem:[#allocation8 + $0x48] sm:$0xff]
    %v194 = vld [vmem:[#allocation8 + $0x50] sm:$0xff]
    %v195 = vld [vmem:[#allocation8 + $0x58] sm:$0xff]
    %v196 = vld [vmem:[#allocation8 + $0x60] sm:$0xff]
    %v197 = vld [vmem:[#allocation8 + $0x68] sm:$0xff]
    %v198 = vld [vmem:[#allocation8 + $0x70] sm:$0xff]
    %v199 = vld [vmem:[#allocation8 + $0x78] sm:$0xff]
    %v200 = vld [vmem:[#allocation10] sm:$0xff]
    %v201 = vld [vmem:[#allocation10 + $0x8] sm:$0xff]
    %vm202 = vcmask 523264
    %v204 = vsel %vm202, %v181, 0
    %206 = vmatprep.subr.mxu0 %v185
    %207 = vmatpush1.msra.mxu0 %v184
    %208 = vmatprep.subr.mxu0 %v187
    %209 = vmatpush1.msra.mxu0 %v186
    %210 = vmatprep.subr.mxu0 %v189
    %211 = vmatpush1.msra.mxu0 %v188
    %212 = vmatprep.subr.mxu0 %v191
    %213 = vmatpush1.msra.mxu0 %v190
    %214 = vmatprep.subr.mxu0 %v193
    %215 = vmatpush1.msra.mxu0 %v192
    %216 = vmatprep.subr.mxu0 %v195
    %217 = vmatpush1.msra.mxu0 %v194
    %218 = vmatprep.subr.mxu0 %v197
    %219 = vmatpush1.msra.mxu0 %v196
    %220 = vmatprep.subr.mxu0 %v199
    %221 = vmatpush1.msra.mxu0 %v198
    %222 = vmatprep.subr.mxu0 0.0
    %223 = vmatpush1.msra.mxu0 0.0
    %224 = vmatprep.subr.mxu0 0.0
    %225 = vmatpush1.msra.mxu0 0.0
    %226 = vmatprep.subr.mxu0 0.0
    %227 = vmatpush1.msra.mxu0 0.0
    %228 = vmatprep.subr.mxu0 0.0
    %229 = vmatpush1.msra.mxu0 0.0
    %230 = vmatprep.subr.mxu0 0.0
    %231 = vmatpush1.msra.mxu0 0.0
    %232 = vmatprep.subr.mxu0 0.0
    %233 = vmatpush1.msra.mxu0 0.0
    %234 = vmatprep.subr.mxu0 0.0
    %235 = vmatpush1.msra.mxu0 0.0
    %236 = vmatprep.subr.mxu0 0.0
    %237 = vmatpush1.msra.mxu0 0.0
    %238 = vmatprep.subr.mxu0 0.0
    %239 = vmatpush1.msra.mxu0 0.0
    %240 = vmatprep.subr.mxu0 0.0
    %241 = vmatpush1.msra.mxu0 0.0
    %242 = vmatprep.subr.mxu0 0.0
    %243 = vmatpush1.msra.mxu0 0.0
    %244 = vmatprep.subr.mxu0 0.0
    %245 = vmatpush1.msra.mxu0 0.0
    %246 = vmatprep.subr.mxu0 0.0
    %247 = vmatpush1.msra.mxu0 0.0
    %248 = vmatprep.subr.mxu0 0.0
    %249 = vmatpush1.msra.mxu0 0.0
    %250 = vmatprep.subr.mxu0 0.0
    %251 = vmatpush1.msra.mxu0 0.0
    %252 = vmatprep.subr.mxu0 0.0
    %253 = vmatpush1.msra.mxu0 0.0
    %254 = vmatprep.subr.mxu0 0.0
    %255 = vmatpush1.msra.mxu0 0.0
    %256 = vmatprep.subr.mxu0 0.0
    %257 = vmatpush1.msra.mxu0 0.0
    %258 = vmatprep.subr.mxu0 0.0
    %259 = vmatpush1.msra.mxu0 0.0
    %260 = vmatprep.subr.mxu0 0.0
    %261 = vmatpush1.msra.mxu0 0.0
    %262 = vmatprep.subr.mxu0 0.0
    %263 = vmatpush1.msra.mxu0 0.0
    %264 = vmatprep.subr.mxu0 0.0
    %265 = vmatpush1.msra.mxu0 0.0
    %266 = vmatprep.subr.mxu0 0.0
    %267 = vmatpush1.msra.mxu0 0.0
    %268 = vmatprep.subr.mxu0 0.0
    %269 = vmatpush1.msra.mxu0 0.0
    %270 = vmatprep.mubr.f32.mxu0 0.0
    %271 = vmatmul.mubr.f32.gmra.mrb[0].mxu0 %v204
    %v272 = vpop.f32.mrb[0].mxu0
    %v273 = vadd.f32 %v200, %v272
    %v274 = vpop.f32.mrb[0].mxu0
    %v275 = vadd.f32 %v201, %v274
    %276 = vdwg.mxu0
    %v277 = vld [vmem:[%s5] sm:$0xff]
    %v278 = vld [vmem:[#allocation11] sm:$0xff]
    %v279 = vld [vmem:[#allocation11 + $0x8] sm:$0xff]
    %v280 = vld [vmem:[#allocation11 + $0x10] sm:$0xff]
    %v281 = vld [vmem:[#allocation11 + $0x18] sm:$0xff]
    %v282 = vld [vmem:[#allocation11 + $0x20] sm:$0xff]
    %v283 = vld [vmem:[#allocation11 + $0x28] sm:$0xff]
    %v284 = vld [vmem:[#allocation11 + $0x30] sm:$0xff]
    %v285 = vld [vmem:[#allocation11 + $0x38] sm:$0xff]
    %v286 = vld [vmem:[#allocation11 + $0x40] sm:$0xff]
    %v287 = vld [vmem:[#allocation11 + $0x48] sm:$0xff]
    %v288 = vld [vmem:[#allocation11 + $0x50] sm:$0xff]
    %v289 = vld [vmem:[#allocation11 + $0x58] sm:$0xff]
    %v290 = vld [vmem:[#allocation11 + $0x60] sm:$0xff]
    %v291 = vld [vmem:[#allocation11 + $0x68] sm:$0xff]
    %v292 = vld [vmem:[#allocation11 + $0x70] sm:$0xff]
    %v293 = vld [vmem:[#allocation11 + $0x78] sm:$0xff]
    %v295 = vsel %vm202, %v277, 0
    %297 = vmatprep.subr.mxu0 %v279
    %298 = vmatpush1.msra.mxu0 %v278
    %299 = vmatprep.subr.mxu0 %v281
    %300 = vmatpush1.msra.mxu0 %v280
    %301 = vmatprep.subr.mxu0 %v283
    %302 = vmatpush1.msra.mxu0 %v282
    %303 = vmatprep.subr.mxu0 %v285
    %304 = vmatpush1.msra.mxu0 %v284
    %305 = vmatprep.subr.mxu0 %v287
    %306 = vmatpush1.msra.mxu0 %v286
    %307 = vmatprep.subr.mxu0 %v289
    %308 = vmatpush1.msra.mxu0 %v288
    %309 = vmatprep.subr.mxu0 %v291
    %310 = vmatpush1.msra.mxu0 %v290
    %311 = vmatprep.subr.mxu0 %v293
    %312 = vmatpush1.msra.mxu0 %v292
    %313 = vmatprep.subr.mxu0 0.0
    %314 = vmatpush1.msra.mxu0 0.0
    %315 = vmatprep.subr.mxu0 0.0
    %316 = vmatpush1.msra.mxu0 0.0
    %317 = vmatprep.subr.mxu0 0.0
    %318 = vmatpush1.msra.mxu0 0.0
    %319 = vmatprep.subr.mxu0 0.0
    %320 = vmatpush1.msra.mxu0 0.0
    %321 = vmatprep.subr.mxu0 0.0
    %322 = vmatpush1.msra.mxu0 0.0
    %323 = vmatprep.subr.mxu0 0.0
    %324 = vmatpush1.msra.mxu0 0.0
    %325 = vmatprep.subr.mxu0 0.0
    %326 = vmatpush1.msra.mxu0 0.0
    %327 = vmatprep.subr.mxu0 0.0
    %328 = vmatpush1.msra.mxu0 0.0
    %329 = vmatprep.subr.mxu0 0.0
    %330 = vmatpush1.msra.mxu0 0.0
    %331 = vmatprep.subr.mxu0 0.0
    %332 = vmatpush1.msra.mxu0 0.0
    %333 = vmatprep.subr.mxu0 0.0
    %334 = vmatpush1.msra.mxu0 0.0
    %335 = vmatprep.subr.mxu0 0.0
    %336 = vmatpush1.msra.mxu0 0.0
    %337 = vmatprep.subr.mxu0 0.0
    %338 = vmatpush1.msra.mxu0 0.0
    %339 = vmatprep.subr.mxu0 0.0
    %340 = vmatpush1.msra.mxu0 0.0
    %341 = vmatprep.subr.mxu0 0.0
    %342 = vmatpush1.msra.mxu0 0.0
    %343 = vmatprep.subr.mxu0 0.0
    %344 = vmatpush1.msra.mxu0 0.0
    %345 = vmatprep.subr.mxu0 0.0
    %346 = vmatpush1.msra.mxu0 0.0
    %347 = vmatprep.subr.mxu0 0.0
    %348 = vmatpush1.msra.mxu0 0.0
    %349 = vmatprep.subr.mxu0 0.0
    %350 = vmatpush1.msra.mxu0 0.0
    %351 = vmatprep.subr.mxu0 0.0
    %352 = vmatpush1.msra.mxu0 0.0
    %353 = vmatprep.subr.mxu0 0.0
    %354 = vmatpush1.msra.mxu0 0.0
    %355 = vmatprep.subr.mxu0 0.0
    %356 = vmatpush1.msra.mxu0 0.0
    %357 = vmatprep.subr.mxu0 0.0
    %358 = vmatpush1.msra.mxu0 0.0
    %359 = vmatprep.subr.mxu0 0.0
    %360 = vmatpush1.msra.mxu0 0.0
    %361 = vmatprep.mubr.f32.mxu0 0.0
    %362 = vmatmul.mubr.f32.gmra.mrb[0].mxu0 %v295
    %v363 = vpop.f32.mrb[0].mxu0
    %v364 = vadd.f32 0.0, %v363
    %v365 = vpop.f32.mrb[0].mxu0
    %v366 = vadd.f32 0.0, %v365
    %367 = vdwg.mxu0
    %v368 = vadd.f32 %v273, %v364
    %v369 = vadd.f32 %v275, %v366
    %v370 = vld [vmem:[#allocation2] sm:$0xff]
    %v371 = vld [vmem:[#allocation2 + $0x8] sm:$0xff]
    %v372 = vsub.f32 1.0, %v370
    %v373 = vsub.f32 1.0, %v371
    %v374 = vmul.f32 %v372, %v368
    %v375 = vmul.f32 %v373, %v369
    %v376 = vadd.f32 %v374, %v370
    %v377 = vadd.f32 %v375, %v371
    %378 = vst [vmem:[#allocation13] sm:$0xff] %v376
    %379 = vst [vmem:[#allocation13 + $0x8] sm:$0xff] %v377
    // Predicated region
    $region54: #{tpu_custom_call.1} parent=1 // pred_check
      _
    $region55: #{tpu_custom_call.1} parent=1 // pred_check_branch
      %381 = sbr.rel (0) target = $region57
    $region56: #{tpu_custom_call.1} parent=1 // pred_region
      %s383 = ssub.s32 256, 256
      %384 = vsyncadd [#allocation4], %s383
      %s386 = sshll.u32 [#allocation13], 4
      %s387 = int_to_ptr.vmem [resolvable:$true] %s386
      %389 = dma.vmem_to_hbm [thread:$0]  %s387, 256, %s7, [#allocation4]
    $region57: #{tpu_custom_call.1} parent=1 // pred_fallthru
      _
    // Predicated region
    $region58: #{tpu_custom_call.1} parent=1 // pred_check
      _
    $region59: #{tpu_custom_call.1} parent=1 // pred_check_branch
      %391 = sbr.rel (0) target = $region61
    $region60: #{tpu_custom_call.1} parent=1 // pred_region
      %392 = dma.done [#allocation4], 256
    $region61: #{tpu_custom_call.1} parent=1 // pred_fallthru
      _
    %393 = vsyncpa [#allocation3], 1
    %394 = vsyncpa [#allocation6], 1
    %395 = vsyncpa [#allocation9], 1
    %396 = vsyncpa [#allocation12], 1
    %397 = vsyncpa [#allocation4], 1

</llo_original>
